<compile_context>
chip_gen: v5e
topology: v5e:2x2
jax: 0.10.0
libtpu: 0.0.40
codegen_flags: <defaults>
</compile_context>

<pallas_src>
import functools

import jax
import jax.numpy as jnp
from jax.experimental import pallas as pl
from jax.experimental.pallas import tpu as pltpu


def _round_up(x, m):
    return ((x + m - 1) // m) * m


# ----------------------------------------------------------------------------- kernels
def _swiglu_kernel_stream(x_ref, w12_ref, b12_ref, wp_ref, bp_ref, o_ref, acc_ref, *, th):
    """Streamed H-reduction variant: grid = (M/tm, H/th), reduction axis last."""
    k = pl.program_id(1)

    @pl.when(k == 0)
    def _():
        acc_ref[...] = jnp.zeros_like(acc_ref)

    x = x_ref[...]                                                     # (tm, E) bf16
    # Fused fc_1+fc_2 for this H tile on the MXU, f32 accumulation, f32 bias add.
    h12 = jnp.dot(x, w12_ref[...], preferred_element_type=jnp.float32) + b12_ref[...]
    h1 = h12[:, :th]
    h2 = h12[:, th:]
    # SiLU(h1) * h2  (sigmoid -> EUP, muls -> VPU), bounded to (tm, th) in f32.
    h = (h1 * jax.nn.sigmoid(h1)) * h2

    # proj contribution of this H tile, accumulated across the reduction axis.
    acc_ref[...] += jnp.dot(h.astype(wp_ref.dtype), wp_ref[...],
                            preferred_element_type=jnp.float32)

    @pl.when(k == pl.num_programs(1) - 1)
    def _():
        o_ref[...] = (acc_ref[...] + bp_ref[...]).astype(o_ref.dtype)


def _swiglu_kernel_resident(x_ref, w12_ref, b12_ref, wp_ref, bp_ref, o_ref, *, hdim):
    """Fully-resident-weights fast path: grid = (M/tm,), weights DMA'd once."""
    x = x_ref[...]                                                     # (tm, E) bf16
    h12 = jnp.dot(x, w12_ref[...], preferred_element_type=jnp.float32) + b12_ref[...]
    h1 = h12[:, :hdim]
    h2 = h12[:, hdim:]
    h = (h1 * jax.nn.sigmoid(h1)) * h2
    out = jnp.dot(h.astype(wp_ref.dtype), wp_ref[...],
                  preferred_element_type=jnp.float32) + bp_ref[...]
    o_ref[...] = out.astype(o_ref.dtype)


# ----------------------------------------------------------------------------- wrapper
def _hw_plan():
    """Per-generation VMEM budget + v5-class detection (both best-effort)."""
    vmem_cap = 64 * 1024 * 1024                      # conservative fallback (v7x per-TC)
    try:
        vmem_cap = int(pltpu.get_tpu_info().vmem_capacity_bytes)
    except Exception:
        pass
    v5_class = False
    try:
        kind = jax.devices()[0].device_kind.lower()
        v5_class = any(t in kind for t in ("v2", "v3", "v4", "v5"))
    except Exception:
        pass
    budget = max(min(int(vmem_cap * 0.8), vmem_cap - (8 << 20)), 32 << 20)
    return budget, v5_class


def swiglu_mlp(x, w1_t, b1, w2_t, b2, wp_t, bp, *, tm=None, th=None,
               compute_dtype=jnp.bfloat16):
    """SwiGLU MLP forward: proj(silu(fc_1(x)) * fc_2(x)).   Dropout = identity (inference).

    x: (..., E);  w1_t / w2_t: (E, H);  wp_t: (H, E);  b1 / b2: (H,);  bp: (E,).
    Weights are the transposed (in, out) form of the PyTorch (out, in) Linear weights.
    """
    # TODO(synk): training-mode dropout (stochastic mask via pltpu.prng_*) not implemented.
    orig_shape = x.shape
    E = x.shape[-1]
    H = w1_t.shape[1]
    M = 1
    for d in x.shape[:-1]:
        M *= d
    out_dtype = x.dtype

    budget, v5_class = _hw_plan()

    cdt = compute_dtype
    xb = jnp.dtype(cdt).itemsize          # activation (compute) bytes
    wb = jnp.dtype(cdt).itemsize          # weight (compute) bytes
    ob = jnp.dtype(out_dtype).itemsize    # output bytes
    bb = 4                                # biases kept f32

    sub = 16                              # sublane alignment (bf16 packing)
    lane = 128 if v5_class else 256       # MXU panel width: 4x128^2 (v5e) vs 2x256^2

    # ---- token tile (tm): big enough to amortize weight re-streaming, >=2 tiles on big M.
    if tm is None:
        tm_ = min(512, _round_up(M, sub))
        if M >= 256:
            tm_ = min(tm_, _round_up(-(-M // 2), 128))   # keep both TCs busy (grid(0)>=2)
    else:
        tm_ = max(sub, _round_up(int(tm), 8))
    tm_ = max(sub, (tm_ // sub) * sub)

    def stream_need(tm_v, th_v, nbuf):
        inter = tm_v * th_v * (3 * 4 + wb)               # h1,h2,h in f32 + bf16 cast of h
        return (2 * tm_v * E * xb                        # x tile (double-buffered)
                + 2 * tm_v * E * ob                      # out tile (double-buffered)
                + nbuf * (2 * E * th_v + th_v * E) * wb  # fused W12 + Wp tiles
                + 2 * (2 * th_v + E) * bb                # bias tiles
                + tm_v * E * 4                           # f32 proj accumulator scratch
                + inter + (4 << 20))

    def resident_need(tm_v, h_v):
        inter = tm_v * h_v * (3 * 4 + wb)
        return (2 * tm_v * E * xb + 2 * tm_v * E * ob
                + 2 * (2 * E * h_v + h_v * E) * wb       # all weights (x2: conservative buffering)
                + 2 * (2 * h_v + E) * bb
                + inter + (4 << 20))

    # ---- resident fast path: all weights VMEM-resident, no H reduction axis.
    resident = False
    nbuf = 2
    if th is None:
        h_res = _round_up(H, 128)
        for tm_try in sorted({tm_, 256, 128}, reverse=True):
            if tm_try <= tm_ and resident_need(tm_try, h_res) <= budget:
                resident = True
                tm_ = tm_try
                th_ = h_res
                h_pad = h_res
                break

    # ---- streamed path: derive th (then tm) from the budget.
    if not resident:
        if th is None:
            th_cap = 256 if v5_class else 512            # v5e: bound vst/spill traffic
            th_ = min(th_cap, _round_up(H, lane))
            th_ = max(lane, (th_ // lane) * lane)
        else:
            th_ = max(128, (int(th) // 128) * 128)
        while stream_need(tm_, th_, 2) > budget and th_ > lane:
            th_ -= lane                                  # shrink th first ...
        while stream_need(tm_, th_, 2) > budget and tm_ > 128:
            tm_ = max(128, tm_ - 128)                    # ... then tm
        h_pad = _round_up(H, th_)
        grid_h = h_pad // th_
        # Deeper weight-stream buffering when the reduction is deep and VMEM allows
        # (naturally disabled on VMEM-tight v7x budgets).
        if grid_h >= 3 and stream_need(tm_, th_, 3) <= budget:
            nbuf = 3

    m_pad = _round_up(M, tm_)
    grid_m = m_pad // tm_

    # ---- operand prep: pad, cast to compute dtype, fuse/interleave fc_1+fc_2 weights.
    x2d = x.reshape(M, E).astype(cdt)
    if m_pad != M:
        x2d = jnp.pad(x2d, ((0, m_pad - M), (0, 0)))

    def pad_cols(w):   # (E, H) -> (E, h_pad)
        return w if w.shape[1] == h_pad else jnp.pad(w, ((0, 0), (0, h_pad - w.shape[1])))

    def pad_rows(w):   # (H, E) -> (h_pad, E)
        return w if w.shape[0] == h_pad else jnp.pad(w, ((0, h_pad - w.shape[0]), (0, 0)))

    def pad_vec(v):    # (H,) -> (h_pad,)
        return v if v.shape[0] == h_pad else jnp.pad(v, (0, h_pad - v.shape[0]))

    n_blk = h_pad // th_
    w1p = pad_cols(w1_t).astype(cdt)
    w2p = pad_cols(w2_t).astype(cdt)
    # H-tile k of the fused weight holds [W1_k | W2_k] so one block index serves both.
    w12 = jnp.concatenate(
        [w1p.reshape(E, n_blk, th_), w2p.reshape(E, n_blk, th_)], axis=2
    ).reshape(E, 2 * h_pad)
    b1p = pad_vec(b1).astype(jnp.float32)
    b2p = pad_vec(b2).astype(jnp.float32)
    b12 = jnp.concatenate(
        [b1p.reshape(n_blk, th_), b2p.reshape(n_blk, th_)], axis=1
    ).reshape(1, 2 * h_pad)
    wpp = pad_rows(wp_t).astype(cdt)
    bp2 = bp.reshape(1, E).astype(jnp.float32)

    # ---- advisory cost estimate (weights counted once per re-stream).
    w_streams = 1 if resident else grid_m
    cost = pl.CostEstimate(
        flops=2 * m_pad * E * (2 * h_pad) + 2 * m_pad * h_pad * E,
        transcendentals=m_pad * h_pad,
        bytes_accessed=(m_pad * E * xb + m_pad * E * ob
                        + (w12.size + wpp.size) * wb * w_streams
                        + (b12.size + bp2.size) * bb),
    )

    if resident:
        grid_spec = pltpu.PrefetchScalarGridSpec(
            num_scalar_prefetch=0,
            grid=(grid_m,),
            in_specs=[
                pl.BlockSpec((tm_, E), lambda i: (i, 0)),          # x tile
                pl.BlockSpec((E, 2 * h_pad), lambda i: (0, 0)),    # fused W12 (resident)
                pl.BlockSpec((1, 2 * h_pad), lambda i: (0, 0)),    # fused biases
                pl.BlockSpec((h_pad, E), lambda i: (0, 0)),        # Wp (resident)
                pl.BlockSpec((1, E), lambda i: (0, 0)),            # bp
            ],
            out_specs=pl.BlockSpec((tm_, E), lambda i: (i, 0)),
        )
        kernel = functools.partial(_swiglu_kernel_resident, hdim=h_pad)
        dim_sem = ("parallel",)
    else:
        if nbuf == 3:
            w12_spec = pl.BlockSpec((E, 2 * th_), lambda i, k: (0, k),
                                    pipeline_mode=pl.Buffered(3))
            wp_spec = pl.BlockSpec((th_, E), lambda i, k: (k, 0),
                                   pipeline_mode=pl.Buffered(3))
        else:
            w12_spec = pl.BlockSpec((E, 2 * th_), lambda i, k: (0, k))
            wp_spec = pl.BlockSpec((th_, E), lambda i, k: (k, 0))
        grid_spec = pltpu.PrefetchScalarGridSpec(
            num_scalar_prefetch=0,
            grid=(grid_m, grid_h),                       # (tokens, hidden-reduction last)
            in_specs=[
                pl.BlockSpec((tm_, E), lambda i, k: (i, 0)),       # x tile
                w12_spec,                                          # fused W12 H-tile (streamed)
                pl.BlockSpec((1, 2 * th_), lambda i, k: (0, k)),   # fused bias H-tile
                wp_spec,                                           # Wp H-tile (streamed)
                pl.BlockSpec((1, E), lambda i, k: (0, 0)),         # bp (finalize only)
            ],
            out_specs=pl.BlockSpec((tm_, E), lambda i, k: (i, 0)), # resident across k
            scratch_shapes=[pltpu.VMEM((tm_, E), jnp.float32)],    # proj accumulator
        )
        kernel = functools.partial(_swiglu_kernel_stream, th=th_)
        dim_sem = ("parallel", "arbitrary")

    out2d = pl.pallas_call(
        kernel,
        out_shape=jax.ShapeDtypeStruct((m_pad, E), out_dtype),
        grid_spec=grid_spec,
        compiler_params=pltpu.CompilerParams(
            dimension_semantics=dim_sem,
            vmem_limit_bytes=int(budget),
        ),
        cost_estimate=cost,
    )(x2d, w12, b12, wpp, bp2)

    if m_pad != M:
        out2d = out2d[:M]
    return out2d.reshape(orig_shape)


def _reference(x, w1_t, b1, w2_t, b2, wp_t, bp):
    h1 = x @ w1_t + b1
    h2 = x @ w2_t + b2
    h = jax.nn.silu(h1) * h2
    return h @ wp_t + bp


if __name__ == "__main__":
    # Small but lane-aligned shapes: batch=2, seq=8, embed=128, hidden=256.
    B, S, E, H = 2, 8, 128, 256
    key = jax.random.PRNGKey(0)
    kx, k1, kb1, k2, kb2, kp, kbp = jax.random.split(key, 7)

    x = jax.random.normal(kx, (B, S, E), dtype=jnp.float32)
    # PyTorch Linear weight is (out, in); we store the transposed (in, out) form.
    w1_t = jax.random.normal(k1, (E, H), dtype=jnp.float32) * 0.02
    b1 = jax.random.normal(kb1, (H,), dtype=jnp.float32) * 0.02
    w2_t = jax.random.normal(k2, (E, H), dtype=jnp.float32) * 0.02
    b2 = jax.random.normal(kb2, (H,), dtype=jnp.float32) * 0.02
    wp_t = jax.random.normal(kp, (H, E), dtype=jnp.float32) * 0.02
    bp = jax.random.normal(kbp, (E,), dtype=jnp.float32) * 0.02

    ref = _reference(x, w1_t, b1, w2_t, b2, wp_t, bp)

    # 1) auto plan: small weights -> fully-resident-weights fast path (single grid axis).
    out = jax.block_until_ready(swiglu_mlp(x, w1_t, b1, w2_t, b2, wp_t, bp))
    assert out.shape == (B, S, E)
    assert jnp.allclose(out, ref, atol=1e-2, rtol=1e-2), "mismatch (resident path)"

    # 2) forced streamed path: th=128 -> grid (1, 2); exercises acc init/accumulate/finalize.
    out_s = jax.block_until_ready(swiglu_mlp(x, w1_t, b1, w2_t, b2, wp_t, bp, th=128))
    assert jnp.allclose(out_s, ref, atol=1e-2, rtol=1e-2), "mismatch (streamed path)"

    # 3) ragged token count -> exercises M padding + output slicing.
    x3 = x[:1, :5]
    ref3 = _reference(x3, w1_t, b1, w2_t, b2, wp_t, bp)
    out3 = jax.block_until_ready(swiglu_mlp(x3, w1_t, b1, w2_t, b2, wp_t, bp))
    assert out3.shape == (1, 5, E)
    assert jnp.allclose(out3, ref3, atol=1e-2, rtol=1e-2), "mismatch (padded M path)"

    print("KERNEL_OK")
</pallas_src>

<mosaic_0001>
module attributes {stable_mosaic.version = 11 : i64} {
  func.func @_swiglu_kernel_resident(%arg0: i32, %arg1: memref<16x128xbf16, #tpu.memory_space<vmem>>, %arg2: memref<128x512xbf16, #tpu.memory_space<vmem>>, %arg3: memref<1x512xf32, #tpu.memory_space<vmem>>, %arg4: memref<256x128xbf16, #tpu.memory_space<vmem>>, %arg5: memref<1x128xf32, #tpu.memory_space<vmem>>, %arg6: memref<16x128xf32, #tpu.memory_space<vmem>>) attributes {dimension_semantics = [#tpu.dimension_semantics<parallel>], iteration_bounds = array<i64: 1>, scalar_prefetch = 0 : i64, scratch_operands = 0 : i64, tpu.core_type = #tpu.core_type<tc>, window_params = [{transform_indices = @transform_0, window_bounds = array<i64: 16, 128>}, {pipeline_mode = #tpu.pipeline_mode<synchronous>, transform_indices = @transform_1, window_bounds = array<i64: 128, 512>}, {pipeline_mode = #tpu.pipeline_mode<synchronous>, transform_indices = @transform_2, window_bounds = array<i64: 1, 512>}, {pipeline_mode = #tpu.pipeline_mode<synchronous>, transform_indices = @transform_3, window_bounds = array<i64: 256, 128>}, {pipeline_mode = #tpu.pipeline_mode<synchronous>, transform_indices = @transform_4, window_bounds = array<i64: 1, 128>}, {transform_indices = @transform_5, window_bounds = array<i64: 16, 128>}]} {
    %c0 = arith.constant 0 : index
    %c0_0 = arith.constant 0 : index
    %0 = vector.load %arg1[%c0, %c0_0] : memref<16x128xbf16, #tpu.memory_space<vmem>>, vector<16x128xbf16>
    %c0_1 = arith.constant 0 : index
    %c0_2 = arith.constant 0 : index
    %1 = vector.load %arg2[%c0_1, %c0_2] : memref<128x512xbf16, #tpu.memory_space<vmem>>, vector<128x512xbf16>
    %cst = arith.constant dense<0.000000e+00> : vector<16x512xf32>
    %2 = tpu.matmul %0, %1, %cst {dimension_numbers = #tpu.dot_dimension_numbers<[1], [0], [0], [1], [0, 0, 1, 1], [], []>} : vector<16x128xbf16>, vector<128x512xbf16>, vector<16x512xf32> -> vector<16x512xf32>
    %c0_3 = arith.constant 0 : index
    %c0_4 = arith.constant 0 : index
    %3 = vector.load %arg3[%c0_3, %c0_4] : memref<1x512xf32, #tpu.memory_space<vmem>>, vector<1x512xf32>
    %4 = vector.broadcast %3 : vector<1x512xf32> to vector<16x512xf32>
    %5 = arith.addf %2, %4 : vector<16x512xf32>
    %6 = vector.extract_strided_slice %5 {offsets = [0, 0], sizes = [16, 256], strides = [1, 1]} : vector<16x512xf32> to vector<16x256xf32>
    %7 = vector.extract_strided_slice %5 {offsets = [0, 256], sizes = [16, 256], strides = [1, 1]} : vector<16x512xf32> to vector<16x256xf32>
    %8 = arith.negf %6 : vector<16x256xf32>
    %9 = math.exp %8 : vector<16x256xf32>
    %cst_5 = arith.constant 1.000000e+00 : f32
    %10 = vector.broadcast %cst_5 : f32 to vector<16x256xf32>
    %11 = arith.addf %10, %9 : vector<16x256xf32>
    %12 = arith.divf %10, %11 : vector<16x256xf32>
    %13 = arith.mulf %6, %12 : vector<16x256xf32>
    %14 = arith.mulf %13, %7 : vector<16x256xf32>
    %15 = arith.truncf %14 : vector<16x256xf32> to vector<16x256xbf16>
    %c0_6 = arith.constant 0 : index
    %c0_7 = arith.constant 0 : index
    %16 = vector.load %arg4[%c0_6, %c0_7] : memref<256x128xbf16, #tpu.memory_space<vmem>>, vector<256x128xbf16>
    %cst_8 = arith.constant dense<0.000000e+00> : vector<16x128xf32>
    %17 = tpu.matmul %15, %16, %cst_8 {dimension_numbers = #tpu.dot_dimension_numbers<[1], [0], [0], [1], [0, 0, 1, 1], [], []>} : vector<16x256xbf16>, vector<256x128xbf16>, vector<16x128xf32> -> vector<16x128xf32>
    %c0_9 = arith.constant 0 : index
    %c0_10 = arith.constant 0 : index
    %18 = vector.load %arg5[%c0_9, %c0_10] : memref<1x128xf32, #tpu.memory_space<vmem>>, vector<1x128xf32>
    %19 = vector.broadcast %18 : vector<1x128xf32> to vector<16x128xf32>
    %20 = arith.addf %17, %19 : vector<16x128xf32>
    %c0_11 = arith.constant 0 : index
    %c0_12 = arith.constant 0 : index
    %21 = vector.load %arg6[%c0_11, %c0_12] : memref<16x128xf32, #tpu.memory_space<vmem>>, vector<16x128xf32>
    tpu.vector_store %arg6[%c0_11, %c0_12], %20 {strides = array<i32>} : memref<16x128xf32, #tpu.memory_space<vmem>>, vector<16x128xf32>,
    return
  }
  func.func @transform_0(%arg0: i32) -> (i32, i32) {
    %c0_i32 = arith.constant 0 : i32
    %c0_i32_0 = arith.constant 0 : i32
    return %arg0, %c0_i32 : i32, i32
  }
  func.func @transform_1(%arg0: i32) -> (i32, i32) {
    %c0_i32 = arith.constant 0 : i32
    %c0_i32_0 = arith.constant 0 : i32
    %c0_i32_1 = arith.constant 0 : i32
    return %c0_i32, %c0_i32_0 : i32, i32
  }
  func.func @transform_2(%arg0: i32) -> (i32, i32) {
    %c0_i32 = arith.constant 0 : i32
    %c0_i32_0 = arith.constant 0 : i32
    %c0_i32_1 = arith.constant 0 : i32
    return %c0_i32, %c0_i32_0 : i32, i32
  }
  func.func @transform_3(%arg0: i32) -> (i32, i32) {
    %c0_i32 = arith.constant 0 : i32
    %c0_i32_0 = arith.constant 0 : i32
    %c0_i32_1 = arith.constant 0 : i32
    return %c0_i32, %c0_i32_0 : i32, i32
  }
  func.func @transform_4(%arg0: i32) -> (i32, i32) {
    %c0_i32 = arith.constant 0 : i32
    %c0_i32_0 = arith.constant 0 : i32
    %c0_i32_1 = arith.constant 0 : i32
    return %c0_i32, %c0_i32_0 : i32, i32
  }
  func.func @transform_5(%arg0: i32) -> (i32, i32) {
    %c0_i32 = arith.constant 0 : i32
    %c0_i32_0 = arith.constant 0 : i32
    return %arg0, %c0_i32 : i32, i32
  }
}

</mosaic_0001>

<llo_original>
// kernel: tpu_custom_call.1
$region0: #{tpu_custom_call.1}
  #allocation0 [shape = 'u32[]', space=smem, size = 0x4, offset = 0x4, fixed_abs, tag = 'smem constant byte address 0x4 - core index']
  #allocation1 [shape = 'u32[72,128]{1,0:T(1,128)}', space=vmem, size = 0x9000, scoped, tag = 'internal scratch']
  %s0 = inlined_call_operand.hbm [shape: bf16[16,128], index: 0, kind: input, shape index: {}]
  %s1 = inlined_call_operand.hbm [shape: bf16[128,512], index: 1, kind: input, shape index: {}]
  %s2 = inlined_call_operand.hbm [shape: f32[1,512], index: 2, kind: input, shape index: {}]
  %s3 = inlined_call_operand.hbm [shape: bf16[256,128], index: 3, kind: input, shape index: {}]
  %s4 = inlined_call_operand.vmem [shape: f32[1,128], index: 4, kind: input, shape index: {}]
  %s5 = inlined_call_operand.hbm [shape: f32[16,128], index: 5, kind: output, shape index: {}]
  %s6 = sld [smem:[#allocation0]]
  $region46: #{tpu_custom_call.1} parent=0
    _
  %s8 = ssub.s32 1, %s6
  %s9 = scalar_select 0, %s8, %s6
  $region1: #{tpu_custom_call.1} parent=0
    #allocation2 [shape = 'u8[4096]{0}', space=vmem, size = 0x1000, scoped, tag = 'input window, operand 0, single buffered']
    #allocation3 [shape = 's32[1]{0}', space=sflag, size = 0x4, scoped, tag = 'scoped memory for tpu_custom_call.1']
    #allocation4 [shape = 's32[1]{0}', space=sflag, size = 0x4, scoped, tag = 'scoped memory for tpu_custom_call.1']
    #allocation5 [shape = 'u8[131072]{0}', space=vmem, size = 0x20000, scoped, tag = 'input window, operand 1, single buffered']
    #allocation6 [shape = 's32[1]{0}', space=sflag, size = 0x4, scoped, tag = 'scoped memory for tpu_custom_call.1']
    #allocation7 [shape = 'u8[2048]{0}', space=vmem, size = 0x800, scoped, tag = 'input window, operand 2, single buffered']
    #allocation8 [shape = 'u8[65536]{0}', space=vmem, size = 0x10000, scoped, tag = 'input window, operand 3, single buffered']
    #allocation9 [shape = 's32[1]{0}', space=sflag, size = 0x4, scoped, tag = 'scoped memory for tpu_custom_call.1']
    #allocation10 [shape = 'u8[8192]{0}', space=vmem, size = 0x2000, scoped, tag = 'output window, operand 0, single buffered']
    %10 = vsyncpa [#allocation3], 0
    %11 = vsyncpa [#allocation6], 0
    %12 = vsyncpa [#allocation9], 0
    %13 = vsyncpa [#allocation4], 0
    // Predicated region
    $region2: #{tpu_custom_call.1} parent=1 // pred_check
      _
    $region3: #{tpu_custom_call.1} parent=1 // pred_check_branch
      %15 = sbr.rel (0) target = $region5
    $region4: #{tpu_custom_call.1} parent=1 // pred_region
      %17 = vsyncadd [#allocation3], 0
      %s18 = sshll.u32 %s0, 4
      %s19 = int_to_ptr.hbm [resolvable:$true] %s18
      %s20 = sshll.u32 [#allocation2], 4
      %s21 = int_to_ptr.vmem [resolvable:$true] %s20
      %26 = dma.hbm_to_vmem [thread:$0]  %s19, 128, %s21, [#allocation3], 64, 64, 4
    $region5: #{tpu_custom_call.1} parent=1 // pred_fallthru
      _
    // Predicated region
    $region6: #{tpu_custom_call.1} parent=1 // pred_check
      _
    $region7: #{tpu_custom_call.1} parent=1 // pred_check_branch
      %28 = sbr.rel (0) target = $region9
    $region8: #{tpu_custom_call.1} parent=1 // pred_region
      %30 = vsyncadd [#allocation6], 0
      %s31 = sshll.u32 %s1, 4
      %s32 = int_to_ptr.hbm [resolvable:$true] %s31
      %s33 = sshll.u32 [#allocation5], 4
      %s34 = int_to_ptr.vmem [resolvable:$true] %s33
      %39 = dma.hbm_to_vmem [thread:$0]  %s32, 4096, %s34, [#allocation6], 256, 256, 16
    $region9: #{tpu_custom_call.1} parent=1 // pred_fallthru
      _
    // Predicated region
    $region10: #{tpu_custom_call.1} parent=1 // pred_check
      _
    $region11: #{tpu_custom_call.1} parent=1 // pred_check_branch
      %41 = sbr.rel (0) target = $region13
    $region12: #{tpu_custom_call.1} parent=1 // pred_region
      %43 = vsyncadd [#allocation6], 0
      %s45 = sshll.u32 %s2, 4
      %s46 = int_to_ptr.hbm [resolvable:$true] %s45
      %s47 = sshll.u32 [#allocation7], 4
      %s48 = int_to_ptr.vmem [resolvable:$true] %s47
      %50 = dma.hbm_to_vmem [thread:$0]  %s46, 64, %s48, [#allocation6]
    $region13: #{tpu_custom_call.1} parent=1 // pred_fallthru
      _
    // Predicated region
    $region14: #{tpu_custom_call.1} parent=1 // pred_check
      _
    $region15: #{tpu_custom_call.1} parent=1 // pred_check_branch
      %52 = sbr.rel (0) target = $region17
    $region16: #{tpu_custom_call.1} parent=1 // pred_region
      %54 = vsyncadd [#allocation9], 0
      %s55 = sshll.u32 %s3, 4
      %s56 = int_to_ptr.hbm [resolvable:$true] %s55
      %s57 = sshll.u32 [#allocation8], 4
      %s58 = int_to_ptr.vmem [resolvable:$true] %s57
      %63 = dma.hbm_to_vmem [thread:$0]  %s56, 2048, %s58, [#allocation9], 64, 64, 4
    $region17: #{tpu_custom_call.1} parent=1 // pred_fallthru
      _
    // Predicated region
    $region18: #{tpu_custom_call.1} parent=1 // pred_check
      _
    $region19: #{tpu_custom_call.1} parent=1 // pred_check_branch
      %65 = sbr.rel (0) target = $region21
    $region20: #{tpu_custom_call.1} parent=1 // pred_region
      _
    $region21: #{tpu_custom_call.1} parent=1 // pred_fallthru
      _
    // Predicated region
    $region22: #{tpu_custom_call.1} parent=1 // pred_check
      _
    $region23: #{tpu_custom_call.1} parent=1 // pred_check_branch
      %67 = sbr.rel (0) target = $region25
    $region24: #{tpu_custom_call.1} parent=1 // pred_region
      %69 = dma.done [#allocation3], 128
    $region25: #{tpu_custom_call.1} parent=1 // pred_fallthru
      _
    // Predicated region
    $region26: #{tpu_custom_call.1} parent=1 // pred_check
      _
    $region27: #{tpu_custom_call.1} parent=1 // pred_check_branch
      %71 = sbr.rel (0) target = $region29
    $region28: #{tpu_custom_call.1} parent=1 // pred_region
      %73 = dma.done [#allocation6], 4096
    $region29: #{tpu_custom_call.1} parent=1 // pred_fallthru
      _
    // Predicated region
    $region30: #{tpu_custom_call.1} parent=1 // pred_check
      _
    $region31: #{tpu_custom_call.1} parent=1 // pred_check_branch
      %75 = sbr.rel (0) target = $region33
    $region32: #{tpu_custom_call.1} parent=1 // pred_region
      %77 = dma.done [#allocation6], 64
    $region33: #{tpu_custom_call.1} parent=1 // pred_fallthru
      _
    // Predicated region
    $region34: #{tpu_custom_call.1} parent=1 // pred_check
      _
    $region35: #{tpu_custom_call.1} parent=1 // pred_check_branch
      %79 = sbr.rel (0) target = $region37
    $region36: #{tpu_custom_call.1} parent=1 // pred_region
      %81 = dma.done [#allocation9], 2048
    $region37: #{tpu_custom_call.1} parent=1 // pred_fallthru
      _
    %v82 = vld [vmem:[#allocation2] sm:$0xf]
    %v83 = vld [vmem:[#allocation2 + $0x4] sm:$0xf]
    %v84 = vld [vmem:[#allocation5] sm:$0xff]
    %v85 = vld [vmem:[#allocation5 + $0x8] sm:$0xff]
    %v86 = vld [vmem:[#allocation5 + $0x10] sm:$0xff]
    %v87 = vld [vmem:[#allocation5 + $0x18] sm:$0xff]
    %v88 = vld [vmem:[#allocation5 + $0x20] sm:$0xff]
    %v89 = vld [vmem:[#allocation5 + $0x28] sm:$0xff]
    %v90 = vld [vmem:[#allocation5 + $0x30] sm:$0xff]
    %v91 = vld [vmem:[#allocation5 + $0x38] sm:$0xff]
    %v92 = vld [vmem:[#allocation5 + $0x40] sm:$0xff]
    %v93 = vld [vmem:[#allocation5 + $0x48] sm:$0xff]
    %v94 = vld [vmem:[#allocation5 + $0x50] sm:$0xff]
    %v95 = vld [vmem:[#allocation5 + $0x58] sm:$0xff]
    %v96 = vld [vmem:[#allocation5 + $0x60] sm:$0xff]
    %v97 = vld [vmem:[#allocation5 + $0x68] sm:$0xff]
    %v98 = vld [vmem:[#allocation5 + $0x70] sm:$0xff]
    %v99 = vld [vmem:[#allocation5 + $0x78] sm:$0xff]
    %v100 = vld [vmem:[#allocation5 + $0x80] sm:$0xff]
    %v101 = vld [vmem:[#allocation5 + $0x88] sm:$0xff]
    %v102 = vld [vmem:[#allocation5 + $0x90] sm:$0xff]
    %v103 = vld [vmem:[#allocation5 + $0x98] sm:$0xff]
    %v104 = vld [vmem:[#allocation5 + $0xa0] sm:$0xff]
    %v105 = vld [vmem:[#allocation5 + $0xa8] sm:$0xff]
    %v106 = vld [vmem:[#allocation5 + $0xb0] sm:$0xff]
    %v107 = vld [vmem:[#allocation5 + $0xb8] sm:$0xff]
    %v108 = vld [vmem:[#allocation5 + $0xc0] sm:$0xff]
    %v109 = vld [vmem:[#allocation5 + $0xc8] sm:$0xff]
    %v110 = vld [vmem:[#allocation5 + $0xd0] sm:$0xff]
    %v111 = vld [vmem:[#allocation5 + $0xd8] sm:$0xff]
    %v112 = vld [vmem:[#allocation5 + $0xe0] sm:$0xff]
    %v113 = vld [vmem:[#allocation5 + $0xe8] sm:$0xff]
    %v114 = vld [vmem:[#allocation5 + $0xf0] sm:$0xff]
    %v115 = vld [vmem:[#allocation5 + $0xf8] sm:$0xff]
    %v116 = vld [vmem:[#allocation7] sm:$0xf]
    %v118 = vperm.slane %v116, 0
    %v119 = vperm.slane %v116, 1
    %v120 = vperm.slane %v116, 2
    %v121 = vperm.slane %v116, 3
    %v128 = vunpack.c.l.b16 %v82
    %v129 = vunpack.c.l.b16 %v83
    %v130 = vpack.c.b16 %v129, %v128
    %v164 = vunpack.c.l.b16 %v84
    %v165 = vunpack.c.h.b16 %v84
    %v166 = vunpack.c.l.b16 %v85
    %v167 = vunpack.c.h.b16 %v85
    %v168 = vunpack.c.l.b16 %v86
    %v169 = vunpack.c.h.b16 %v86
    %v170 = vunpack.c.l.b16 %v87
    %v171 = vunpack.c.h.b16 %v87
    %v172 = vunpack.c.l.b16 %v88
    %v173 = vunpack.c.h.b16 %v88
    %v174 = vunpack.c.l.b16 %v89
    %v175 = vunpack.c.h.b16 %v89
    %v176 = vunpack.c.l.b16 %v90
    %v177 = vunpack.c.h.b16 %v90
    %v178 = vunpack.c.l.b16 %v91
    %v179 = vunpack.c.h.b16 %v91
    %v180 = vunpack.c.l.b16 %v92
    %v181 = vunpack.c.h.b16 %v92
    %v182 = vunpack.c.l.b16 %v93
    %v183 = vunpack.c.h.b16 %v93
    %v184 = vunpack.c.l.b16 %v94
    %v185 = vunpack.c.h.b16 %v94
    %v186 = vunpack.c.l.b16 %v95
    %v187 = vunpack.c.h.b16 %v95
    %v188 = vunpack.c.l.b16 %v96
    %v189 = vunpack.c.h.b16 %v96
    %v190 = vunpack.c.l.b16 %v97
    %v191 = vunpack.c.h.b16 %v97
    %v192 = vunpack.c.l.b16 %v98
    %v193 = vunpack.c.h.b16 %v98
    %v194 = vunpack.c.l.b16 %v99
    %v195 = vunpack.c.h.b16 %v99
    %v196 = vunpack.c.l.b16 %v100
    %v197 = vunpack.c.h.b16 %v100
    %v198 = vunpack.c.l.b16 %v101
    %v199 = vunpack.c.h.b16 %v101
    %v200 = vunpack.c.l.b16 %v102
    %v201 = vunpack.c.h.b16 %v102
    %v202 = vunpack.c.l.b16 %v103
    %v203 = vunpack.c.h.b16 %v103
    %v204 = vunpack.c.l.b16 %v104
    %v205 = vunpack.c.h.b16 %v104
    %v206 = vunpack.c.l.b16 %v105
    %v207 = vunpack.c.h.b16 %v105
    %v208 = vunpack.c.l.b16 %v106
    %v209 = vunpack.c.h.b16 %v106
    %v210 = vunpack.c.l.b16 %v107
    %v211 = vunpack.c.h.b16 %v107
    %v212 = vunpack.c.l.b16 %v108
    %v213 = vunpack.c.h.b16 %v108
    %v214 = vunpack.c.l.b16 %v109
    %v215 = vunpack.c.h.b16 %v109
    %v216 = vunpack.c.l.b16 %v110
    %v217 = vunpack.c.h.b16 %v110
    %v218 = vunpack.c.l.b16 %v111
    %v219 = vunpack.c.h.b16 %v111
    %v220 = vunpack.c.l.b16 %v112
    %v221 = vunpack.c.h.b16 %v112
    %v222 = vunpack.c.l.b16 %v113
    %v223 = vunpack.c.h.b16 %v113
    %v224 = vunpack.c.l.b16 %v114
    %v225 = vunpack.c.h.b16 %v114
    %v226 = vunpack.c.l.b16 %v115
    %v227 = vunpack.c.h.b16 %v115
    %v228 = vpack.c.b16 %v168, %v164
    %v229 = vpack.c.b16 %v169, %v165
    %v230 = vpack.c.b16 %v170, %v166
    %v231 = vpack.c.b16 %v171, %v167
    %v232 = vpack.c.b16 %v176, %v172
    %v233 = vpack.c.b16 %v177, %v173
    %v234 = vpack.c.b16 %v178, %v174
    %v235 = vpack.c.b16 %v179, %v175
    %v236 = vpack.c.b16 %v184, %v180
    %v237 = vpack.c.b16 %v185, %v181
    %v238 = vpack.c.b16 %v186, %v182
    %v239 = vpack.c.b16 %v187, %v183
    %v240 = vpack.c.b16 %v192, %v188
    %v241 = vpack.c.b16 %v193, %v189
    %v242 = vpack.c.b16 %v194, %v190
    %v243 = vpack.c.b16 %v195, %v191
    %v244 = vpack.c.b16 %v200, %v196
    %v245 = vpack.c.b16 %v201, %v197
    %v246 = vpack.c.b16 %v202, %v198
    %v247 = vpack.c.b16 %v203, %v199
    %v248 = vpack.c.b16 %v208, %v204
    %v249 = vpack.c.b16 %v209, %v205
    %v250 = vpack.c.b16 %v210, %v206
    %v251 = vpack.c.b16 %v211, %v207
    %v252 = vpack.c.b16 %v216, %v212
    %v253 = vpack.c.b16 %v217, %v213
    %v254 = vpack.c.b16 %v218, %v214
    %v255 = vpack.c.b16 %v219, %v215
    %v256 = vpack.c.b16 %v224, %v220
    %v257 = vpack.c.b16 %v225, %v221
    %v258 = vpack.c.b16 %v226, %v222
    %v259 = vpack.c.b16 %v227, %v223
    %292 = vmatpush.bf16.msra.mxu0 %v256
    %293 = vmatpush.bf16.msra.mxu0 %v252
    %294 = vmatpush.bf16.msra.mxu0 %v248
    %295 = vmatpush.bf16.msra.mxu0 %v244
    %296 = vmatpush.bf16.msra.mxu0 %v240
    %297 = vmatpush.bf16.msra.mxu0 %v236
    %298 = vmatpush.bf16.msra.mxu0 %v232
    %299 = vmatpush.bf16.msra.mxu0 %v228
    %300 = vmatmul.bf16.gmra.mxu0 %v130
    %v301 = vpop.f32.mrf.mxu0
    %v302 = vadd.f32 %v118, %v301
    %v303 = vpop.f32.mrf.mxu0
    %v304 = vadd.f32 %v118, %v303
    %305 = vdwg.mxu0
    %306 = vmatpush.bf16.msra.mxu0 %v257
    %307 = vmatpush.bf16.msra.mxu0 %v253
    %308 = vmatpush.bf16.msra.mxu0 %v249
    %309 = vmatpush.bf16.msra.mxu0 %v245
    %310 = vmatpush.bf16.msra.mxu0 %v241
    %311 = vmatpush.bf16.msra.mxu0 %v237
    %312 = vmatpush.bf16.msra.mxu0 %v233
    %313 = vmatpush.bf16.msra.mxu0 %v229
    %314 = vmatmul.bf16.gmra.mxu0 %v130
    %v315 = vpop.f32.mrf.mxu0
    %v316 = vadd.f32 %v119, %v315
    %v317 = vpop.f32.mrf.mxu0
    %v318 = vadd.f32 %v119, %v317
    %319 = vdwg.mxu0
    %320 = vmatpush.bf16.msra.mxu0 %v258
    %321 = vmatpush.bf16.msra.mxu0 %v254
    %322 = vmatpush.bf16.msra.mxu0 %v250
    %323 = vmatpush.bf16.msra.mxu0 %v246
    %324 = vmatpush.bf16.msra.mxu0 %v242
    %325 = vmatpush.bf16.msra.mxu0 %v238
    %326 = vmatpush.bf16.msra.mxu0 %v234
    %327 = vmatpush.bf16.msra.mxu0 %v230
    %328 = vmatmul.bf16.gmra.mxu0 %v130
    %v329 = vpop.f32.mrf.mxu0
    %v330 = vadd.f32 %v120, %v329
    %v331 = vpop.f32.mrf.mxu0
    %v332 = vadd.f32 %v120, %v331
    %333 = vdwg.mxu0
    %334 = vmatpush.bf16.msra.mxu0 %v259
    %335 = vmatpush.bf16.msra.mxu0 %v255
    %336 = vmatpush.bf16.msra.mxu0 %v251
    %337 = vmatpush.bf16.msra.mxu0 %v247
    %338 = vmatpush.bf16.msra.mxu0 %v243
    %339 = vmatpush.bf16.msra.mxu0 %v239
    %340 = vmatpush.bf16.msra.mxu0 %v235
    %341 = vmatpush.bf16.msra.mxu0 %v231
    %342 = vmatmul.bf16.gmra.mxu0 %v130
    %v343 = vpop.f32.mrf.mxu0
    %v344 = vadd.f32 %v121, %v343
    %v345 = vpop.f32.mrf.mxu0
    %v346 = vadd.f32 %v121, %v345
    %347 = vdwg.mxu0
    %v348 = vxor.u32 %v302, 2147483648
    %v349 = vxor.u32 %v316, 2147483648
    %v350 = vxor.u32 %v304, 2147483648
    %v351 = vxor.u32 %v318, 2147483648
    %v352 = vmul.f32 %v348, 1.442695
    %v353 = vpow.pop %v352
    %v354 = vmul.f32 %v349, 1.442695
    %v355 = vpow.pop %v354
    %v356 = vmul.f32 %v350, 1.442695
    %v357 = vpow.pop %v356
    %v358 = vmul.f32 %v351, 1.442695
    %v359 = vpow.pop %v358
    %v360 = vadd.f32 %v353, 1.0
    %v361 = vadd.f32 %v355, 1.0
    %v362 = vadd.f32 %v357, 1.0
    %v363 = vadd.f32 %v359, 1.0
    %v364 = vrcp.pop %v360
    %v365 = vmul.f32 %v360, %v364
    %v366 = vsub.f32 1.0, %v365
    %v367 = vmul.f32 %v364, %v366
    %v368 = vadd.f32 %v364, %v367
    %vm369 = vweird.f32 %v360
    %vm370 = vweird.f32 %v364
    %vm371 = vmor %vm369, %vm370
    %v372 = vsel %vm371, %v364, %v368
    %v373 = vand.u32 2147483647, %v360
    %vm374 = vcmp.eq.f32.partialorder %v373, 8.507059e+37
    %v375 = vand.u32 %v360, 2147483648
    %v376 = vor.u32 1.1754944e-38, %v375
    %v377 = vsel %vm374, %v376, %v372
    %v378 = vmul.f32 1.0, %v377
    %v379 = vrcp.pop %v361
    %v380 = vmul.f32 %v361, %v379
    %v381 = vsub.f32 1.0, %v380
    %v382 = vmul.f32 %v379, %v381
    %v383 = vadd.f32 %v379, %v382
    %vm384 = vweird.f32 %v361
    %vm385 = vweird.f32 %v379
    %vm386 = vmor %vm384, %vm385
    %v387 = vsel %vm386, %v379, %v383
    %v388 = vand.u32 2147483647, %v361
    %vm389 = vcmp.eq.f32.partialorder %v388, 8.507059e+37
    %v390 = vand.u32 %v361, 2147483648
    %v391 = vor.u32 1.1754944e-38, %v390
    %v392 = vsel %vm389, %v391, %v387
    %v393 = vmul.f32 1.0, %v392
    %v394 = vrcp.pop %v362
    %v395 = vmul.f32 %v362, %v394
    %v396 = vsub.f32 1.0, %v395
    %v397 = vmul.f32 %v394, %v396
    %v398 = vadd.f32 %v394, %v397
    %vm399 = vweird.f32 %v362
    %vm400 = vweird.f32 %v394
    %vm401 = vmor %vm399, %vm400
    %v402 = vsel %vm401, %v394, %v398
    %v403 = vand.u32 2147483647, %v362
    %vm404 = vcmp.eq.f32.partialorder %v403, 8.507059e+37
    %v405 = vand.u32 %v362, 2147483648
    %v406 = vor.u32 1.1754944e-38, %v405
    %v407 = vsel %vm404, %v406, %v402
    %v408 = vmul.f32 1.0, %v407
    %v409 = vrcp.pop %v363
    %v410 = vmul.f32 %v363, %v409
    %v411 = vsub.f32 1.0, %v410
    %v412 = vmul.f32 %v409, %v411
    %v413 = vadd.f32 %v409, %v412
    %vm414 = vweird.f32 %v363
    %vm415 = vweird.f32 %v409
    %vm416 = vmor %vm414, %vm415
    %v417 = vsel %vm416, %v409, %v413
    %v418 = vand.u32 2147483647, %v363
    %vm419 = vcmp.eq.f32.partialorder %v418, 8.507059e+37
    %v420 = vand.u32 %v363, 2147483648
    %v421 = vor.u32 1.1754944e-38, %v420
    %v422 = vsel %vm419, %v421, %v417
    %v423 = vmul.f32 1.0, %v422
    %v424 = vmul.f32 %v302, %v378
    %v425 = vmul.f32 %v316, %v393
    %v426 = vmul.f32 %v304, %v408
    %v427 = vmul.f32 %v318, %v423
    %v428 = vmul.f32 %v424, %v330
    %v429 = vmul.f32 %v425, %v344
    %v430 = vmul.f32 %v426, %v332
    %v431 = vmul.f32 %v427, %v346
    %v432 = vpack.c.bf16 %v430, %v428
    %v433 = vpack.c.bf16 %v431, %v429
    %v434 = vld [vmem:[#allocation8] sm:$0xf]
    %v435 = vld [vmem:[#allocation8 + $0x4] sm:$0xf]
    %v436 = vld [vmem:[#allocation8 + $0x8] sm:$0xf]
    %v437 = vld [vmem:[#allocation8 + $0xc] sm:$0xf]
    %v438 = vld [vmem:[#allocation8 + $0x10] sm:$0xf]
    %v439 = vld [vmem:[#allocation8 + $0x14] sm:$0xf]
    %v440 = vld [vmem:[#allocation8 + $0x18] sm:$0xf]
    %v441 = vld [vmem:[#allocation8 + $0x1c] sm:$0xf]
    %v442 = vld [vmem:[#allocation8 + $0x20] sm:$0xf]
    %v443 = vld [vmem:[#allocation8 + $0x24] sm:$0xf]
    %v444 = vld [vmem:[#allocation8 + $0x28] sm:$0xf]
    %v445 = vld [vmem:[#allocation8 + $0x2c] sm:$0xf]
    %v446 = vld [vmem:[#allocation8 + $0x30] sm:$0xf]
    %v447 = vld [vmem:[#allocation8 + $0x34] sm:$0xf]
    %v448 = vld [vmem:[#allocation8 + $0x38] sm:$0xf]
    %v449 = vld [vmem:[#allocation8 + $0x3c] sm:$0xf]
    %v450 = vld [vmem:[#allocation8 + $0x40] sm:$0xf]
    %v451 = vld [vmem:[#allocation8 + $0x44] sm:$0xf]
    %v452 = vld [vmem:[#allocation8 + $0x48] sm:$0xf]
    %v453 = vld [vmem:[#allocation8 + $0x4c] sm:$0xf]
    %v454 = vld [vmem:[#allocation8 + $0x50] sm:$0xf]
    %v455 = vld [vmem:[#allocation8 + $0x54] sm:$0xf]
    %v456 = vld [vmem:[#allocation8 + $0x58] sm:$0xf]
    %v457 = vld [vmem:[#allocation8 + $0x5c] sm:$0xf]
    %v458 = vld [vmem:[#allocation8 + $0x60] sm:$0xf]
    %v459 = vld [vmem:[#allocation8 + $0x64] sm:$0xf]
    %v460 = vld [vmem:[#allocation8 + $0x68] sm:$0xf]
    %v461 = vld [vmem:[#allocation8 + $0x6c] sm:$0xf]
    %v462 = vld [vmem:[#allocation8 + $0x70] sm:$0xf]
    %v463 = vld [vmem:[#allocation8 + $0x74] sm:$0xf]
    %v464 = vld [vmem:[#allocation8 + $0x78] sm:$0xf]
    %v465 = vld [vmem:[#allocation8 + $0x7c] sm:$0xf]
    %v466 = vld [vmem:[%s4] sm:$0x1]
    %v468 = vperm.slane %v466, 0
    %v502 = vunpack.c.l.b16 %v434
    %v503 = vunpack.c.l.b16 %v435
    %v504 = vunpack.c.l.b16 %v436
    %v505 = vunpack.c.l.b16 %v437
    %v506 = vunpack.c.l.b16 %v438
    %v507 = vunpack.c.l.b16 %v439
    %v508 = vunpack.c.l.b16 %v440
    %v509 = vunpack.c.l.b16 %v441
    %v510 = vunpack.c.l.b16 %v442
    %v511 = vunpack.c.l.b16 %v443
    %v512 = vunpack.c.l.b16 %v444
    %v513 = vunpack.c.l.b16 %v445
    %v514 = vunpack.c.l.b16 %v446
    %v515 = vunpack.c.l.b16 %v447
    %v516 = vunpack.c.l.b16 %v448
    %v517 = vunpack.c.l.b16 %v449
    %v518 = vunpack.c.l.b16 %v450
    %v519 = vunpack.c.l.b16 %v451
    %v520 = vunpack.c.l.b16 %v452
    %v521 = vunpack.c.l.b16 %v453
    %v522 = vunpack.c.l.b16 %v454
    %v523 = vunpack.c.l.b16 %v455
    %v524 = vunpack.c.l.b16 %v456
    %v525 = vunpack.c.l.b16 %v457
    %v526 = vunpack.c.l.b16 %v458
    %v527 = vunpack.c.l.b16 %v459
    %v528 = vunpack.c.l.b16 %v460
    %v529 = vunpack.c.l.b16 %v461
    %v530 = vunpack.c.l.b16 %v462
    %v531 = vunpack.c.l.b16 %v463
    %v532 = vunpack.c.l.b16 %v464
    %v533 = vunpack.c.l.b16 %v465
    %v534 = vpack.c.b16 %v503, %v502
    %v535 = vpack.c.b16 %v505, %v504
    %v536 = vpack.c.b16 %v507, %v506
    %v537 = vpack.c.b16 %v509, %v508
    %v538 = vpack.c.b16 %v511, %v510
    %v539 = vpack.c.b16 %v513, %v512
    %v540 = vpack.c.b16 %v515, %v514
    %v541 = vpack.c.b16 %v517, %v516
    %v542 = vpack.c.b16 %v519, %v518
    %v543 = vpack.c.b16 %v521, %v520
    %v544 = vpack.c.b16 %v523, %v522
    %v545 = vpack.c.b16 %v525, %v524
    %v546 = vpack.c.b16 %v527, %v526
    %v547 = vpack.c.b16 %v529, %v528
    %v548 = vpack.c.b16 %v531, %v530
    %v549 = vpack.c.b16 %v533, %v532
    %566 = vmatpush.bf16.msra.mxu0 %v541
    %567 = vmatpush.bf16.msra.mxu0 %v540
    %568 = vmatpush.bf16.msra.mxu0 %v539
    %569 = vmatpush.bf16.msra.mxu0 %v538
    %570 = vmatpush.bf16.msra.mxu0 %v537
    %571 = vmatpush.bf16.msra.mxu0 %v536
    %572 = vmatpush.bf16.msra.mxu0 %v535
    %573 = vmatpush.bf16.msra.mxu0 %v534
    %574 = vmatmul.bf16.gmra.mxu0 %v432
    %v575 = vpop.f32.mrf.mxu0
    %v576 = vadd.f32 %v468, %v575
    %v577 = vpop.f32.mrf.mxu0
    %v578 = vadd.f32 %v468, %v577
    %579 = vdwg.mxu0
    %580 = vmatpush.bf16.msra.mxu0 %v549
    %581 = vmatpush.bf16.msra.mxu0 %v548
    %582 = vmatpush.bf16.msra.mxu0 %v547
    %583 = vmatpush.bf16.msra.mxu0 %v546
    %584 = vmatpush.bf16.msra.mxu0 %v545
    %585 = vmatpush.bf16.msra.mxu0 %v544
    %586 = vmatpush.bf16.msra.mxu0 %v543
    %587 = vmatpush.bf16.msra.mxu0 %v542
    %588 = vmatmul.bf16.gmra.mxu0 %v433
    %v589 = vpop.f32.mrf.mxu0
    %v590 = vadd.f32 %v576, %v589
    %v591 = vpop.f32.mrf.mxu0
    %v592 = vadd.f32 %v578, %v591
    %593 = vdwg.mxu0
    %594 = vst [vmem:[#allocation10] sm:$0xff] %v590
    %595 = vst [vmem:[#allocation10 + $0x8] sm:$0xff] %v592
    // Predicated region
    $region38: #{tpu_custom_call.1} parent=1 // pred_check
      _
    $region39: #{tpu_custom_call.1} parent=1 // pred_check_branch
      %597 = sbr.rel (0) target = $region41
    $region40: #{tpu_custom_call.1} parent=1 // pred_region
      %599 = vsyncadd [#allocation4], 0
      %s600 = sshll.u32 [#allocation10], 4
      %s601 = int_to_ptr.vmem [resolvable:$true] %s600
      %s602 = sshll.u32 %s5, 4
      %s603 = int_to_ptr.hbm [resolvable:$true] %s602
      %608 = dma.vmem_to_hbm [thread:$0]  %s601, 256, %s603, [#allocation4], 128, 128, 8
    $region41: #{tpu_custom_call.1} parent=1 // pred_fallthru
      _
    // Predicated region
    $region42: #{tpu_custom_call.1} parent=1 // pred_check
      _
    $region43: #{tpu_custom_call.1} parent=1 // pred_check_branch
      %610 = sbr.rel (0) target = $region45
    $region44: #{tpu_custom_call.1} parent=1 // pred_region
      %612 = dma.done [#allocation4], 256
    $region45: #{tpu_custom_call.1} parent=1 // pred_fallthru
      _
    %613 = vsyncpa [#allocation3], 1
    %614 = vsyncpa [#allocation6], 1
    %615 = vsyncpa [#allocation9], 1
    %616 = vsyncpa [#allocation4], 1

</llo_original>
